<compile_context>
chip_gen: v7x
topology: tpu7x:2x2x1
jax: 0.10.0
libtpu: 0.0.40
codegen_flags: <defaults>
</compile_context>

<pallas_src>
import functools

import jax
import jax.numpy as jnp
from jax.experimental import pallas as pl
from jax.experimental.pallas import tpu as pltpu


# ----------------------------- kernels ---------------------------------------


def _ffn_kernel_resident(x_ref, w1_ref, b1_ref, w2_ref, b2_ref, out_ref):
    """Whole-H path: y = ReLU(x @ W1 + b1) @ W2 + b2 with resident weights."""
    h = jnp.dot(x_ref[...], w1_ref[...], preferred_element_type=jnp.float32)
    h = jnp.maximum(h + b1_ref[...].astype(jnp.float32), 0.0)
    y = jnp.dot(h.astype(w2_ref.dtype), w2_ref[...],
                preferred_element_type=jnp.float32)
    # TODO(synk): nn.Dropout skipped (inference-mode identity).
    out_ref[...] = (y + b2_ref[...].astype(jnp.float32)).astype(out_ref.dtype)


def _ffn_kernel_tiled(x_ref, w1_ref, b1_ref, w2_ref, b2_ref, out_ref, acc_ref):
    """H-tiled path: grid axis 0 tiles rows ("parallel"), axis 1 tiles the
    hidden dimension ("arbitrary" reduction) with an f32 accumulator."""
    k = pl.program_id(1)

    @pl.when(k == 0)
    def _init():
        acc_ref[...] = jnp.zeros_like(acc_ref)

    h = jnp.dot(x_ref[...], w1_ref[...], preferred_element_type=jnp.float32)
    h = jnp.maximum(h + b1_ref[...].astype(jnp.float32), 0.0)
    acc_ref[...] += jnp.dot(h.astype(w2_ref.dtype), w2_ref[...],
                            preferred_element_type=jnp.float32)

    @pl.when(k == pl.num_programs(1) - 1)
    def _finalize():
        # TODO(synk): nn.Dropout skipped (inference-mode identity).
        out_ref[...] = (acc_ref[...] + b2_ref[...].astype(jnp.float32)).astype(
            out_ref.dtype
        )


# ----------------------------- planning ---------------------------------------


def _round_up(v, m):
    return -(-v // m) * m


def _vmem_capacity_bytes():
    try:
        cap = getattr(pltpu.get_tpu_info(), "vmem_capacity_bytes", None)
        if cap:
            return int(cap)
    except Exception:
        pass
    return 64 << 20  # conservative default (v7x per-TensorCore VMEM)


def _pick_tile_m(m16, upper=512):
    """Row-tile choice: minimal padding, ties broken toward the larger tile
    (better weight-traffic amortisation; matters most on v6e)."""
    if m16 <= upper:
        return m16
    cands = [t for t in (512, 256, 128) if t <= upper] or [128]
    return min(cands, key=lambda t: (_round_up(m16, t), -t))


def _plan_tiles(M, E, H, itemsize, budget):
    """Return (tile_m, tile_h); tile_h is None for the resident-weights path."""
    m16 = _round_up(max(M, 1), 16)

    def fast_bytes(tm):
        return ((2 * tm * E) * 2 * itemsize          # x + out tiles (double-buffered)
                + 2 * (E * H + H * E) * itemsize     # W1 + W2 (conservatively 2x)
                + 2 * (H + E) * itemsize             # biases
                + tm * H * 4)                        # f32 hidden intermediate

    def tiled_bytes(tm, th):
        return ((2 * tm * E) * 2 * itemsize          # x + out tiles
                + 2 * (E * th + th * E) * itemsize   # streamed W1/W2 slices
                + 2 * (th + E) * itemsize            # biases
                + tm * E * 4                         # f32 accumulator scratch
                + tm * th * 4)                       # f32 hidden intermediate

    # ---- resident-weights fast path ------------------------------------
    tm = _pick_tile_m(m16)
    while tm > 128 and fast_bytes(tm) > budget:
        tm //= 2
    tm = max(16, min(tm, m16))
    if fast_bytes(tm) <= budget:
        return tm, None

    # ---- H-tiled reduction path -----------------------------------------
    h_pad = _round_up(H, 128)
    th_cands = [t for t in (512, 256, 128) if h_pad % t == 0]
    tm_cands = sorted({min(t, m16) for t in (_pick_tile_m(m16), 256, 128)},
                      reverse=True)
    for tm in tm_cands:
        for th in th_cands:            # shrink tile_h first, keep tile_m
            if tiled_bytes(tm, th) <= budget:
                return tm, th
    return tm_cands[-1], th_cands[-1]  # best effort (vmem_limit is raised anyway)


# ----------------------------- wrapper ---------------------------------------


def feed_forward(x, w1, b1, w2, b2, *, _force_tile_h=None):
    """y = ReLU(x @ W1 + b1) @ W2 + b2, for x of shape (..., E)."""
    orig_shape = x.shape
    E = orig_shape[-1]
    H = w1.shape[1]
    assert w1.shape == (E, H) and w2.shape == (H, E)
    assert b1.shape[-1] == H and b2.shape[-1] == E

    x2 = x.reshape(-1, E)
    M = x2.shape[0]
    itemsize = jnp.dtype(x.dtype).itemsize

    vmem_cap = _vmem_capacity_bytes()
    plan_budget = int(vmem_cap * 0.70)   # headroom for Mosaic internals / spills
    vmem_limit = int(vmem_cap * 0.85)

    if _force_tile_h is not None:        # test hook: exercise the tiled path
        tile_m = min(_round_up(max(M, 1), 16), 256)
        tile_h = int(_force_tile_h)
    else:
        tile_m, tile_h = _plan_tiles(M, E, H, itemsize, plan_budget)

    # Row padding: multiple of 16 (clean bf16 sublane packing) then of tile_m.
    m_pad = _round_up(_round_up(M, 16), tile_m)
    if m_pad != M:
        x2 = jnp.pad(x2, ((0, m_pad - M), (0, 0)))
    num_m = m_pad // tile_m

    b1 = b1.reshape(1, H)
    b2 = b2.reshape(1, E)

    flops = 4 * m_pad * E * H            # two matmuls, 2 flops per MAC
    if tile_h is None:
        weight_bytes = 2 * E * H * itemsize                  # fetched once
    else:
        weight_bytes = num_m * 2 * E * H * itemsize          # re-streamed per M tile
    cost = pl.CostEstimate(
        flops=flops,
        transcendentals=0,
        bytes_accessed=(2 * m_pad * E + H + E) * itemsize + weight_bytes,
    )

    if tile_h is None:
        # ---------------- resident-weights fast path ----------------------
        out = pl.pallas_call(
            _ffn_kernel_resident,
            out_shape=jax.ShapeDtypeStruct((m_pad, E), x.dtype),
            grid=(num_m,),
            in_specs=[
                pl.BlockSpec((tile_m, E), lambda i: (i, 0)),   # x rows
                pl.BlockSpec((E, H), lambda i: (0, 0)),        # W1 (resident)
                pl.BlockSpec((1, H), lambda i: (0, 0)),        # b1
                pl.BlockSpec((H, E), lambda i: (0, 0)),        # W2 (resident)
                pl.BlockSpec((1, E), lambda i: (0, 0)),        # b2
            ],
            out_specs=pl.BlockSpec((tile_m, E), lambda i: (i, 0)),
            compiler_params=pltpu.CompilerParams(
                dimension_semantics=("parallel",),
                vmem_limit_bytes=vmem_limit,
            ),
            cost_estimate=cost,
        )(x2, w1, b1, w2, b2)
    else:
        # ---------------- H-tiled streaming path --------------------------
        h_pad = _round_up(H, 128)
        if h_pad != H:                   # zero-pad hidden dim: ReLU(0)=0 -> no-op
            w1 = jnp.pad(w1, ((0, 0), (0, h_pad - H)))
            b1 = jnp.pad(b1, ((0, 0), (0, h_pad - H)))
            w2 = jnp.pad(w2, ((0, h_pad - H), (0, 0)))
        num_h = h_pad // tile_h

        out = pl.pallas_call(
            _ffn_kernel_tiled,
            out_shape=jax.ShapeDtypeStruct((m_pad, E), x.dtype),
            grid=(num_m, num_h),
            in_specs=[
                pl.BlockSpec((tile_m, E), lambda i, k: (i, 0)),   # x rows
                pl.BlockSpec((E, tile_h), lambda i, k: (0, k)),   # W1 column slice
                pl.BlockSpec((1, tile_h), lambda i, k: (0, k)),   # b1 slice
                pl.BlockSpec((tile_h, E), lambda i, k: (k, 0)),   # W2 row slice
                pl.BlockSpec((1, E), lambda i, k: (0, 0)),        # b2
            ],
            out_specs=pl.BlockSpec((tile_m, E), lambda i, k: (i, 0)),
            scratch_shapes=[pltpu.VMEM((tile_m, E), jnp.float32)],
            compiler_params=pltpu.CompilerParams(
                # TODO(synk): switch axis 0 to pltpu.CORE_PARALLEL on v7x once
                # num_m >= 2 is guaranteed, so both TensorCores split the rows.
                dimension_semantics=("parallel", "arbitrary"),
                vmem_limit_bytes=vmem_limit,
            ),
            cost_estimate=cost,
        )(x2, w1, b1, w2, b2)

    return out[:M].reshape(orig_shape)


# ----------------------------- reference -------------------------------------


def _ref_ffn(x, w1, b1, w2, b2):
    h = jnp.maximum(x @ w1 + b1.reshape(1, -1), 0.0)
    return h @ w2 + b2.reshape(1, -1)


# -------------------------------- main ---------------------------------------

if __name__ == "__main__":
    # --- test 1: float32, resident-weights fast path ------------------------
    B, T, E = 2, 8, 32
    H = 4 * E

    key = jax.random.PRNGKey(0)
    kx, k1, k2, k3, k4 = jax.random.split(key, 5)
    x = jax.random.normal(kx, (B, T, E), jnp.float32)
    w1 = jax.random.normal(k1, (E, H), jnp.float32) * 0.05
    b1 = jax.random.normal(k2, (H,), jnp.float32) * 0.05
    w2 = jax.random.normal(k3, (H, E), jnp.float32) * 0.05
    b2 = jax.random.normal(k4, (E,), jnp.float32) * 0.05

    out = jax.block_until_ready(feed_forward(x, w1, b1, w2, b2))
    ref = _ref_ffn(x, w1, b1, w2, b2)
    assert out.shape == (B, T, E)
    assert jnp.allclose(out, ref, atol=1e-4, rtol=1e-4), float(
        jnp.max(jnp.abs(out - ref))
    )

    # --- test 2: bfloat16 path (halved HBM/VMEM traffic, f32 MXU accum) -----
    cast = functools.partial(jnp.asarray, dtype=jnp.bfloat16)
    out_bf16 = jax.block_until_ready(
        feed_forward(cast(x), cast(w1), cast(b1), cast(w2), cast(b2))
    )
    assert out_bf16.dtype == jnp.bfloat16 and out_bf16.shape == (B, T, E)
    assert jnp.allclose(out_bf16.astype(jnp.float32), ref, atol=5e-2, rtol=5e-2), float(
        jnp.max(jnp.abs(out_bf16.astype(jnp.float32) - ref))
    )

    # --- test 3: force the H-tiled reduction path (accumulator scratch) -----
    E2 = 64
    H2 = 4 * E2
    kx2, k5, k6, k7, k8 = jax.random.split(jax.random.PRNGKey(1), 5)
    x2 = jax.random.normal(kx2, (B, T, E2), jnp.float32)
    w1b = jax.random.normal(k5, (E2, H2), jnp.float32) * 0.05
    b1b = jax.random.normal(k6, (H2,), jnp.float32) * 0.05
    w2b = jax.random.normal(k7, (H2, E2), jnp.float32) * 0.05
    b2b = jax.random.normal(k8, (E2,), jnp.float32) * 0.05

    out_fast = jax.block_until_ready(feed_forward(x2, w1b, b1b, w2b, b2b))
    out_tiled = jax.block_until_ready(
        feed_forward(x2, w1b, b1b, w2b, b2b, _force_tile_h=128)
    )
    ref2 = _ref_ffn(x2, w1b, b1b, w2b, b2b)
    assert out_tiled.shape == (B, T, E2)
    # tiled vs resident differ only in f32 accumulation order -> very tight
    assert jnp.allclose(out_tiled, out_fast, atol=1e-4, rtol=1e-4), float(
        jnp.max(jnp.abs(out_tiled - out_fast))
    )
    assert jnp.allclose(out_tiled, ref2, atol=2e-2, rtol=2e-2), float(
        jnp.max(jnp.abs(out_tiled - ref2))
    )

    print("KERNEL_OK")
</pallas_src>

<mosaic_0001>
module attributes {stable_mosaic.version = 11 : i64} {
  func.func @_ffn_kernel_resident(%arg0: i32, %arg1: memref<16x32xf32, #tpu.memory_space<vmem>>, %arg2: memref<32x128xf32, #tpu.memory_space<vmem>>, %arg3: memref<1x128xf32, #tpu.memory_space<vmem>>, %arg4: memref<128x32xf32, #tpu.memory_space<vmem>>, %arg5: memref<1x32xf32, #tpu.memory_space<vmem>>, %arg6: memref<16x32xf32, #tpu.memory_space<vmem>>) attributes {dimension_semantics = [#tpu.dimension_semantics<parallel>], iteration_bounds = array<i64: 1>, scalar_prefetch = 0 : i64, scratch_operands = 0 : i64, tpu.core_type = #tpu.core_type<tc>, window_params = [{transform_indices = @transform_0, window_bounds = array<i64: 16, 32>}, {pipeline_mode = #tpu.pipeline_mode<synchronous>, transform_indices = @transform_1, window_bounds = array<i64: 32, 128>}, {pipeline_mode = #tpu.pipeline_mode<synchronous>, transform_indices = @transform_2, window_bounds = array<i64: 1, 128>}, {pipeline_mode = #tpu.pipeline_mode<synchronous>, transform_indices = @transform_3, window_bounds = array<i64: 128, 32>}, {pipeline_mode = #tpu.pipeline_mode<synchronous>, transform_indices = @transform_4, window_bounds = array<i64: 1, 32>}, {transform_indices = @transform_5, window_bounds = array<i64: 16, 32>}]} {
    %c0 = arith.constant 0 : index
    %c0_0 = arith.constant 0 : index
    %0 = vector.load %arg1[%c0, %c0_0] : memref<16x32xf32, #tpu.memory_space<vmem>>, vector<16x32xf32>
    %c0_1 = arith.constant 0 : index
    %c0_2 = arith.constant 0 : index
    %1 = vector.load %arg2[%c0_1, %c0_2] : memref<32x128xf32, #tpu.memory_space<vmem>>, vector<32x128xf32>
    %cst = arith.constant dense<0.000000e+00> : vector<16x128xf32>
    %2 = tpu.matmul %0, %1, %cst {dimension_numbers = #tpu.dot_dimension_numbers<[1], [0], [0], [1], [0, 0, 1, 1], [], []>} : vector<16x32xf32>, vector<32x128xf32>, vector<16x128xf32> -> vector<16x128xf32>
    %c0_3 = arith.constant 0 : index
    %c0_4 = arith.constant 0 : index
    %3 = vector.load %arg3[%c0_3, %c0_4] : memref<1x128xf32, #tpu.memory_space<vmem>>, vector<1x128xf32>
    %4 = vector.broadcast %3 : vector<1x128xf32> to vector<16x128xf32>
    %5 = arith.addf %2, %4 : vector<16x128xf32>
    %cst_5 = arith.constant 0.000000e+00 : f32
    %6 = vector.broadcast %cst_5 : f32 to vector<16x128xf32>
    %7 = arith.maximumf %5, %6 : vector<16x128xf32>
    %c0_6 = arith.constant 0 : index
    %c0_7 = arith.constant 0 : index
    %8 = vector.load %arg4[%c0_6, %c0_7] : memref<128x32xf32, #tpu.memory_space<vmem>>, vector<128x32xf32>
    %cst_8 = arith.constant dense<0.000000e+00> : vector<16x32xf32>
    %9 = tpu.matmul %7, %8, %cst_8 {dimension_numbers = #tpu.dot_dimension_numbers<[1], [0], [0], [1], [0, 0, 1, 1], [], []>} : vector<16x128xf32>, vector<128x32xf32>, vector<16x32xf32> -> vector<16x32xf32>
    %c0_9 = arith.constant 0 : index
    %c0_10 = arith.constant 0 : index
    %10 = vector.load %arg5[%c0_9, %c0_10] : memref<1x32xf32, #tpu.memory_space<vmem>>, vector<1x32xf32>
    %11 = vector.broadcast %10 : vector<1x32xf32> to vector<16x32xf32>
    %12 = arith.addf %9, %11 : vector<16x32xf32>
    %c0_11 = arith.constant 0 : index
    %c0_12 = arith.constant 0 : index
    %13 = vector.load %arg6[%c0_11, %c0_12] : memref<16x32xf32, #tpu.memory_space<vmem>>, vector<16x32xf32>
    tpu.vector_store %arg6[%c0_11, %c0_12], %12 {strides = array<i32>} : memref<16x32xf32, #tpu.memory_space<vmem>>, vector<16x32xf32>,
    return
  }
  func.func @transform_0(%arg0: i32) -> (i32, i32) {
    %c0_i32 = arith.constant 0 : i32
    %c0_i32_0 = arith.constant 0 : i32
    return %arg0, %c0_i32 : i32, i32
  }
  func.func @transform_1(%arg0: i32) -> (i32, i32) {
    %c0_i32 = arith.constant 0 : i32
    %c0_i32_0 = arith.constant 0 : i32
    %c0_i32_1 = arith.constant 0 : i32
    return %c0_i32, %c0_i32_0 : i32, i32
  }
  func.func @transform_2(%arg0: i32) -> (i32, i32) {
    %c0_i32 = arith.constant 0 : i32
    %c0_i32_0 = arith.constant 0 : i32
    %c0_i32_1 = arith.constant 0 : i32
    return %c0_i32, %c0_i32_0 : i32, i32
  }
  func.func @transform_3(%arg0: i32) -> (i32, i32) {
    %c0_i32 = arith.constant 0 : i32
    %c0_i32_0 = arith.constant 0 : i32
    %c0_i32_1 = arith.constant 0 : i32
    return %c0_i32, %c0_i32_0 : i32, i32
  }
  func.func @transform_4(%arg0: i32) -> (i32, i32) {
    %c0_i32 = arith.constant 0 : i32
    %c0_i32_0 = arith.constant 0 : i32
    %c0_i32_1 = arith.constant 0 : i32
    return %c0_i32, %c0_i32_0 : i32, i32
  }
  func.func @transform_5(%arg0: i32) -> (i32, i32) {
    %c0_i32 = arith.constant 0 : i32
    %c0_i32_0 = arith.constant 0 : i32
    return %arg0, %c0_i32 : i32, i32
  }
}

</mosaic_0001>

<llo_original>
// kernel: tpu_custom_call.1
$region0: #{tpu_custom_call.1}
  #allocation0 [shape = 'u32[]', space=smem, size = 0x4, offset = 0x4, fixed_abs, tag = 'smem constant byte address 0x4 - core index']
  #allocation1 [shape = 'u32[144,128]{1,0:T(1,128)}', space=vmem, size = 0x12000, scoped, tag = 'internal scratch']
  %s0 = inlined_call_operand.vmem [shape: f32[16,32], index: 0, kind: input, shape index: {}]
  %s1 = inlined_call_operand.vmem [shape: f32[32,128], index: 1, kind: input, shape index: {}]
  %s2 = inlined_call_operand.vmem [shape: f32[1,128], index: 2, kind: input, shape index: {}]
  %s3 = inlined_call_operand.vmem [shape: f32[128,32], index: 3, kind: input, shape index: {}]
  %s4 = inlined_call_operand.vmem [shape: f32[1,32], index: 4, kind: input, shape index: {}]
  %s5 = inlined_call_operand.hbm [shape: f32[16,32], index: 5, kind: output, shape index: {}]
  %s6 = sld [smem:[#allocation0]]
  $region30: #{tpu_custom_call.1} parent=0
    _
  %s8 = ssub.s32 1, %s6
  %s9 = scalar_select 0, %s8, %s6
  $region1: #{tpu_custom_call.1} parent=0
    #allocation2 [shape = 'u8[8192]{0}', space=vmem, size = 0x2000, scoped, tag = 'output window, operand 0, single buffered']
    #allocation3 [shape = 's32[1]{0}', space=sflag, size = 0x4, scoped, tag = 'scoped memory for tpu_custom_call.1']
    %10 = vsyncpa [#allocation3], 0
    // Predicated region
    $region2: #{tpu_custom_call.1} parent=1 // pred_check
      _
    $region3: #{tpu_custom_call.1} parent=1 // pred_check_branch
      %12 = sbr.rel (0) target = $region5
    $region4: #{tpu_custom_call.1} parent=1 // pred_region
      _
    $region5: #{tpu_custom_call.1} parent=1 // pred_fallthru
      _
    // Predicated region
    $region6: #{tpu_custom_call.1} parent=1 // pred_check
      _
    $region7: #{tpu_custom_call.1} parent=1 // pred_check_branch
      %14 = sbr.rel (0) target = $region9
    $region8: #{tpu_custom_call.1} parent=1 // pred_region
      _
    $region9: #{tpu_custom_call.1} parent=1 // pred_fallthru
      _
    // Predicated region
    $region10: #{tpu_custom_call.1} parent=1 // pred_check
      _
    $region11: #{tpu_custom_call.1} parent=1 // pred_check_branch
      %16 = sbr.rel (0) target = $region13
    $region12: #{tpu_custom_call.1} parent=1 // pred_region
      _
    $region13: #{tpu_custom_call.1} parent=1 // pred_fallthru
      _
    // Predicated region
    $region14: #{tpu_custom_call.1} parent=1 // pred_check
      _
    $region15: #{tpu_custom_call.1} parent=1 // pred_check_branch
      %18 = sbr.rel (0) target = $region17
    $region16: #{tpu_custom_call.1} parent=1 // pred_region
      _
    $region17: #{tpu_custom_call.1} parent=1 // pred_fallthru
      _
    // Predicated region
    $region18: #{tpu_custom_call.1} parent=1 // pred_check
      _
    $region19: #{tpu_custom_call.1} parent=1 // pred_check_branch
      %20 = sbr.rel (0) target = $region21
    $region20: #{tpu_custom_call.1} parent=1 // pred_region
      _
    $region21: #{tpu_custom_call.1} parent=1 // pred_fallthru
      _
    %v21 = vld [vmem:[%s0] sm:$0xff]
    %v22 = vld [vmem:[%s0 + $0x8] sm:$0xff]
    %v23 = vld [vmem:[%s1] sm:$0xff]
    %v24 = vld [vmem:[%s1 + $0x8] sm:$0xff]
    %v25 = vld [vmem:[%s1 + $0x10] sm:$0xff]
    %v26 = vld [vmem:[%s1 + $0x18] sm:$0xff]
    %v27 = vld [vmem:[%s2] sm:$0x1]
    %v29 = vlaneseq
    %v30 = vshrl.u32 %v29, 7
    %v31 = vsub.s32 0, %v30
    %v32 = vrot.slane %v27, %v31
    %vm34 = vcmask 261120
    %v36 = vsel %vm34, %v21, 0
    %v39 = vsel %vm34, %v22, 0
    %41 = vmatprep.subr.mxu0 0.0
    %42 = vmatpush1.msra.mxu0 %v23
    %43 = vmatprep.subr.mxu0 0.0
    %44 = vmatpush1.msra.mxu0 %v24
    %45 = vmatprep.subr.mxu0 0.0
    %46 = vmatpush1.msra.mxu0 %v25
    %47 = vmatprep.subr.mxu0 0.0
    %48 = vmatpush1.msra.mxu0 %v26
    %49 = vmatprep.subr.mxu0 0.0
    %50 = vmatpush1.msra.mxu0 0.0
    %51 = vmatprep.subr.mxu0 0.0
    %52 = vmatpush1.msra.mxu0 0.0
    %53 = vmatprep.subr.mxu0 0.0
    %54 = vmatpush1.msra.mxu0 0.0
    %55 = vmatprep.subr.mxu0 0.0
    %56 = vmatpush1.msra.mxu0 0.0
    %57 = vmatprep.subr.mxu0 0.0
    %58 = vmatpush1.msra.mxu0 0.0
    %59 = vmatprep.subr.mxu0 0.0
    %60 = vmatpush1.msra.mxu0 0.0
    %61 = vmatprep.subr.mxu0 0.0
    %62 = vmatpush1.msra.mxu0 0.0
    %63 = vmatprep.subr.mxu0 0.0
    %64 = vmatpush1.msra.mxu0 0.0
    %65 = vmatprep.subr.mxu0 0.0
    %66 = vmatpush1.msra.mxu0 0.0
    %67 = vmatprep.subr.mxu0 0.0
    %68 = vmatpush1.msra.mxu0 0.0
    %69 = vmatprep.subr.mxu0 0.0
    %70 = vmatpush1.msra.mxu0 0.0
    %71 = vmatprep.subr.mxu0 0.0
    %72 = vmatpush1.msra.mxu0 0.0
    %73 = vmatprep.subr.mxu0 0.0
    %74 = vmatpush1.msra.mxu0 0.0
    %75 = vmatprep.subr.mxu0 0.0
    %76 = vmatpush1.msra.mxu0 0.0
    %77 = vmatprep.subr.mxu0 0.0
    %78 = vmatpush1.msra.mxu0 0.0
    %79 = vmatprep.subr.mxu0 0.0
    %80 = vmatpush1.msra.mxu0 0.0
    %81 = vmatprep.subr.mxu0 0.0
    %82 = vmatpush1.msra.mxu0 0.0
    %83 = vmatprep.subr.mxu0 0.0
    %84 = vmatpush1.msra.mxu0 0.0
    %85 = vmatprep.subr.mxu0 0.0
    %86 = vmatpush1.msra.mxu0 0.0
    %87 = vmatprep.subr.mxu0 0.0
    %88 = vmatpush1.msra.mxu0 0.0
    %89 = vmatprep.subr.mxu0 0.0
    %90 = vmatpush1.msra.mxu0 0.0
    %91 = vmatprep.subr.mxu0 0.0
    %92 = vmatpush1.msra.mxu0 0.0
    %93 = vmatprep.subr.mxu0 0.0
    %94 = vmatpush1.msra.mxu0 0.0
    %95 = vmatprep.subr.mxu0 0.0
    %96 = vmatpush1.msra.mxu0 0.0
    %97 = vmatprep.subr.mxu0 0.0
    %98 = vmatpush1.msra.mxu0 0.0
    %99 = vmatprep.subr.mxu0 0.0
    %100 = vmatpush1.msra.mxu0 0.0
    %101 = vmatprep.subr.mxu0 0.0
    %102 = vmatpush1.msra.mxu0 0.0
    %103 = vmatprep.subr.mxu0 0.0
    %104 = vmatpush1.msra.mxu0 0.0
    %105 = vmatprep.mubr.f32.mxu0 0.0
    %106 = vmatmul.mubr.f32.gmra.mrb[0].mxu0 %v36
    %v107 = vpop.f32.mrb[0].mxu0
    %v108 = vadd.f32 %v32, %v107
    %v109 = vpop.f32.mrb[0].mxu0
    %110 = vmatprep.mubr.f32.mxu0 0.0
    %111 = vmatmul.mubr.f32.gmra.mrb[0].mxu0 %v39
    %v112 = vpop.f32.mrb[0].mxu0
    %v113 = vadd.f32 %v32, %v112
    %v114 = vpop.f32.mrb[0].mxu0
    %115 = vdwg.mxu0
    %v116 = vmax.f32 %v108, 0.0
    %v117 = vmax.f32 %v113, 0.0
    %v118 = vld [vmem:[%s3] sm:$0xff]
    %v119 = vld [vmem:[%s3 + $0x8] sm:$0xff]
    %v120 = vld [vmem:[%s3 + $0x10] sm:$0xff]
    %v121 = vld [vmem:[%s3 + $0x18] sm:$0xff]
    %v122 = vld [vmem:[%s3 + $0x20] sm:$0xff]
    %v123 = vld [vmem:[%s3 + $0x28] sm:$0xff]
    %v124 = vld [vmem:[%s3 + $0x30] sm:$0xff]
    %v125 = vld [vmem:[%s3 + $0x38] sm:$0xff]
    %v126 = vld [vmem:[%s3 + $0x40] sm:$0xff]
    %v127 = vld [vmem:[%s3 + $0x48] sm:$0xff]
    %v128 = vld [vmem:[%s3 + $0x50] sm:$0xff]
    %v129 = vld [vmem:[%s3 + $0x58] sm:$0xff]
    %v130 = vld [vmem:[%s3 + $0x60] sm:$0xff]
    %v131 = vld [vmem:[%s3 + $0x68] sm:$0xff]
    %v132 = vld [vmem:[%s3 + $0x70] sm:$0xff]
    %v133 = vld [vmem:[%s3 + $0x78] sm:$0xff]
    %v134 = vld [vmem:[%s4] sm:$0x1]
    %v136 = vlaneseq
    %v137 = vshrl.u32 %v136, 7
    %v138 = vsub.s32 0, %v137
    %v139 = vrot.slane %v134, %v138
    %141 = vmatprep.subr.mxu0 0.0
    %142 = vmatpush1.msra.mxu0 %v118
    %143 = vmatprep.subr.mxu0 0.0
    %144 = vmatpush1.msra.mxu0 %v119
    %145 = vmatprep.subr.mxu0 0.0
    %146 = vmatpush1.msra.mxu0 %v120
    %147 = vmatprep.subr.mxu0 0.0
    %148 = vmatpush1.msra.mxu0 %v121
    %149 = vmatprep.subr.mxu0 0.0
    %150 = vmatpush1.msra.mxu0 %v122
    %151 = vmatprep.subr.mxu0 0.0
    %152 = vmatpush1.msra.mxu0 %v123
    %153 = vmatprep.subr.mxu0 0.0
    %154 = vmatpush1.msra.mxu0 %v124
    %155 = vmatprep.subr.mxu0 0.0
    %156 = vmatpush1.msra.mxu0 %v125
    %157 = vmatprep.subr.mxu0 0.0
    %158 = vmatpush1.msra.mxu0 %v126
    %159 = vmatprep.subr.mxu0 0.0
    %160 = vmatpush1.msra.mxu0 %v127
    %161 = vmatprep.subr.mxu0 0.0
    %162 = vmatpush1.msra.mxu0 %v128
    %163 = vmatprep.subr.mxu0 0.0
    %164 = vmatpush1.msra.mxu0 %v129
    %165 = vmatprep.subr.mxu0 0.0
    %166 = vmatpush1.msra.mxu0 %v130
    %167 = vmatprep.subr.mxu0 0.0
    %168 = vmatpush1.msra.mxu0 %v131
    %169 = vmatprep.subr.mxu0 0.0
    %170 = vmatpush1.msra.mxu0 %v132
    %171 = vmatprep.subr.mxu0 0.0
    %172 = vmatpush1.msra.mxu0 %v133
    %173 = vmatprep.subr.mxu0 0.0
    %174 = vmatpush1.msra.mxu0 0.0
    %175 = vmatprep.subr.mxu0 0.0
    %176 = vmatpush1.msra.mxu0 0.0
    %177 = vmatprep.subr.mxu0 0.0
    %178 = vmatpush1.msra.mxu0 0.0
    %179 = vmatprep.subr.mxu0 0.0
    %180 = vmatpush1.msra.mxu0 0.0
    %181 = vmatprep.subr.mxu0 0.0
    %182 = vmatpush1.msra.mxu0 0.0
    %183 = vmatprep.subr.mxu0 0.0
    %184 = vmatpush1.msra.mxu0 0.0
    %185 = vmatprep.subr.mxu0 0.0
    %186 = vmatpush1.msra.mxu0 0.0
    %187 = vmatprep.subr.mxu0 0.0
    %188 = vmatpush1.msra.mxu0 0.0
    %189 = vmatprep.subr.mxu0 0.0
    %190 = vmatpush1.msra.mxu0 0.0
    %191 = vmatprep.subr.mxu0 0.0
    %192 = vmatpush1.msra.mxu0 0.0
    %193 = vmatprep.subr.mxu0 0.0
    %194 = vmatpush1.msra.mxu0 0.0
    %195 = vmatprep.subr.mxu0 0.0
    %196 = vmatpush1.msra.mxu0 0.0
    %197 = vmatprep.subr.mxu0 0.0
    %198 = vmatpush1.msra.mxu0 0.0
    %199 = vmatprep.subr.mxu0 0.0
    %200 = vmatpush1.msra.mxu0 0.0
    %201 = vmatprep.subr.mxu0 0.0
    %202 = vmatpush1.msra.mxu0 0.0
    %203 = vmatprep.subr.mxu0 0.0
    %204 = vmatpush1.msra.mxu0 0.0
    %205 = vmatprep.mubr.f32.mxu0 0.0
    %206 = vmatmul.mubr.f32.gmra.mrb[0].mxu0 %v116
    %v207 = vpop.f32.mrb[0].mxu0
    %v208 = vadd.f32 %v139, %v207
    %v209 = vpop.f32.mrb[0].mxu0
    %210 = vmatprep.mubr.f32.mxu0 0.0
    %211 = vmatmul.mubr.f32.gmra.mrb[0].mxu0 %v117
    %v212 = vpop.f32.mrb[0].mxu0
    %v213 = vadd.f32 %v139, %v212
    %v214 = vpop.f32.mrb[0].mxu0
    %215 = vdwg.mxu0
    %216 = vst.msk [vmem:[#allocation2] sm:$0xff] %vm34, %v208
    %217 = vst.msk [vmem:[#allocation2 + $0x8] sm:$0xff] %vm34, %v213
    // Predicated region
    $region22: #{tpu_custom_call.1} parent=1 // pred_check
      _
    $region23: #{tpu_custom_call.1} parent=1 // pred_check_branch
      %219 = sbr.rel (0) target = $region25
    $region24: #{tpu_custom_call.1} parent=1 // pred_region
      %s221 = ssub.s32 256, 256
      %222 = vsyncadd [#allocation3], %s221
      %s223 = sshll.u32 [#allocation2], 4
      %s224 = int_to_ptr.vmem [resolvable:$true] %s223
      %229 = dma.vmem_to_hbm [thread:$0]  %s224, 256, %s5, [#allocation3], 128, 128, 8
    $region25: #{tpu_custom_call.1} parent=1 // pred_fallthru
      _
    // Predicated region
    $region26: #{tpu_custom_call.1} parent=1 // pred_check
      _
    $region27: #{tpu_custom_call.1} parent=1 // pred_check_branch
      %231 = sbr.rel (0) target = $region29
    $region28: #{tpu_custom_call.1} parent=1 // pred_region
      %232 = dma.done [#allocation3], 256
    $region29: #{tpu_custom_call.1} parent=1 // pred_fallthru
      _
    %233 = vsyncpa [#allocation3], 1

</llo_original>
